<compile_context>
chip_gen: v6e
topology: v6e:2x2x1
jax: 0.10.0
libtpu: 0.0.40
codegen_flags: <defaults>
</compile_context>

<pallas_src>
import functools

import jax
import jax.numpy as jnp
from jax.experimental import pallas as pl
from jax.experimental.pallas import tpu as pltpu

BN_EPS = 1e-5
LANE = 128


def _danet_kernel(x_ref, w1_ref, b1_ref, w2t_ref, o_ref, *, inv_hw):
    """x_ref: (Bt, C, HWp) slab; gates each (b, c) row by a sigmoid scale."""
    # ---- global average pool over the (zero-padded) spatial axis ----------
    # Padding zeros contribute nothing to the sum; divide by the true H*W.
    pooled = jnp.sum(x_ref[...].astype(jnp.float32), axis=-1) * inv_hw   # (Bt, C)

    # ---- squeeze 1x1 conv (C -> C/8) with BatchNorm folded in, + ReLU -----
    y = jnp.dot(pooled, w1_ref[...], preferred_element_type=jnp.float32)  # (Bt, C8)
    y = jnp.maximum(y + b1_ref[...], 0.0)

    # ---- excite 1x1 conv (C/8 -> C) + sigmoid gate -------------------------
    gate = jax.nn.sigmoid(
        jnp.dot(y, w2t_ref[...], preferred_element_type=jnp.float32))     # (Bt, C)

    # ---- channel-wise rescale (second read of x_ref; keeps vreg pressure
    # bounded instead of carrying a full f32 copy of the slab) ---------------
    o_ref[...] = (x_ref[...].astype(jnp.float32)
                  * gate[:, :, None]).astype(o_ref.dtype)


def danet_forward(x, w1, w2, gamma, beta, running_mean, running_var):
    """x: (B, C, H, W); w1: (C//8, C); w2: (C, C//8). Returns x * sigmoid-gate."""
    B, C, H, W = x.shape
    C8 = w1.shape[0]
    HW = H * W
    HWp = ((HW + LANE - 1) // LANE) * LANE        # lane-dense padded spatial dim

    # ---- fold eval-mode BatchNorm into the squeeze conv --------------------
    inv_std = 1.0 / jnp.sqrt(running_var.astype(jnp.float32) + BN_EPS)
    bn_scale = gamma.astype(jnp.float32) * inv_std                   # (C8,)
    w1_eff = w1.astype(jnp.float32).T * bn_scale[None, :]            # (C, C8)
    b1_eff = (beta.astype(jnp.float32)
              - running_mean.astype(jnp.float32) * bn_scale).reshape(1, C8)
    w2t = w2.astype(jnp.float32).T                                   # (C8, C)

    # ---- lane-dense layout: flatten spatial dims, zero-pad HW to 128k ------
    x_flat = x.reshape(B, C, HW)
    if HWp != HW:
        x_flat = jnp.pad(x_flat, ((0, 0), (0, 0), (0, HWp - HW)))

    # ---- pick Bt: largest divisor of B fitting the per-buffer budget,
    # preferring >=2 grid steps so megacore / v7x can split the batch --------
    itemsize = jnp.dtype(x.dtype).itemsize
    per_buffer_budget = 6 << 20                  # ~6 MiB/buffer -> 4x fits <48 MiB
    divisors = [d for d in range(1, B + 1) if B % d == 0]
    fitting = [d for d in divisors
               if d * C * HWp * itemsize <= per_buffer_budget] or [1]
    multi = [d for d in fitting if B // d >= 2]
    bt = max(multi) if multi else max(fitting)

    block_bytes = bt * C * HWp * itemsize
    # in + out, double-buffered, plus a little slack; capped for v7x's 64 MiB.
    vmem_limit = int(min(48 << 20, max(16 << 20, 4 * block_bytes + (2 << 20))))

    kernel = functools.partial(_danet_kernel, inv_hw=1.0 / float(HW))

    out_flat = pl.pallas_call(
        kernel,
        out_shape=jax.ShapeDtypeStruct((B, C, HWp), x.dtype),
        grid_spec=pltpu.PrefetchScalarGridSpec(
            num_scalar_prefetch=0,
            grid=(B // bt,),
            in_specs=[
                pl.BlockSpec((bt, C, HWp), lambda i: (i, 0, 0)),   # x slab
                pl.BlockSpec((C, C8), lambda i: (0, 0)),           # w1_eff (BN folded)
                pl.BlockSpec((1, C8), lambda i: (0, 0)),           # b1_eff
                pl.BlockSpec((C8, C), lambda i: (0, 0)),           # w2^T
            ],
            out_specs=pl.BlockSpec((bt, C, HWp), lambda i: (i, 0, 0)),
        ),
        compiler_params=pltpu.CompilerParams(
            dimension_semantics=("parallel",),
            vmem_limit_bytes=vmem_limit),
    )(x_flat, w1_eff, b1_eff, w2t)

    if HWp != HW:
        out_flat = out_flat[:, :, :HW]
    return out_flat.reshape(B, C, H, W)


def danet_ref(x, w1, w2, gamma, beta, rm, rv):
    """Pure-JAX reference matching the PyTorch DANet forward (BN in eval mode)."""
    y = jnp.mean(x, axis=(2, 3), keepdims=True)                     # (B,C,1,1)
    y = jnp.einsum('oc,bchw->bohw', w1, y)                          # (B,C8,1,1)
    y = (y - rm[None, :, None, None]) / jnp.sqrt(rv[None, :, None, None] + BN_EPS)
    y = y * gamma[None, :, None, None] + beta[None, :, None, None]
    y = jnp.maximum(y, 0.0)
    y = jnp.einsum('oc,bchw->bohw', w2, y)                          # (B,C,1,1)
    y = jax.nn.sigmoid(y)
    return x * y


def _make_params(key, C):
    C8 = C // 8
    k1, k2 = jax.random.split(key)
    w1 = jax.random.normal(k1, (C8, C), dtype=jnp.float32) * (1.0 / jnp.sqrt(C))
    w2 = jax.random.normal(k2, (C, C8), dtype=jnp.float32) * (1.0 / jnp.sqrt(C8))
    gamma = jnp.ones((C8,), dtype=jnp.float32)
    beta = jnp.zeros((C8,), dtype=jnp.float32)
    rm = jnp.zeros((C8,), dtype=jnp.float32)
    rv = jnp.ones((C8,), dtype=jnp.float32)
    return w1, w2, gamma, beta, rm, rv


if __name__ == "__main__":
    key = jax.random.PRNGKey(0)
    kx1, kx2, kp = jax.random.split(key, 3)

    # Test 1: HW already a multiple of 128 (no padding path).
    B, C, H, W = 2, 32, 16, 16
    w1, w2, gamma, beta, rm, rv = _make_params(kp, C)
    x = jax.random.normal(kx1, (B, C, H, W), dtype=jnp.float32)

    out = jax.block_until_ready(danet_forward(x, w1, w2, gamma, beta, rm, rv))
    ref = jax.block_until_ready(danet_ref(x, w1, w2, gamma, beta, rm, rv))
    assert out.shape == (B, C, H, W)
    assert jnp.allclose(out, ref, atol=1e-5, rtol=1e-5), \
        f"max err {jnp.max(jnp.abs(out - ref))}"

    # Test 2: HW not a multiple of 128 (exercises zero-padding) and B > 2
    # (exercises Bt > 1 / multi-image blocks).
    B2, C2, H2, W2 = 4, 32, 12, 12
    x2 = jax.random.normal(kx2, (B2, C2, H2, W2), dtype=jnp.float32)
    out2 = jax.block_until_ready(danet_forward(x2, w1, w2, gamma, beta, rm, rv))
    ref2 = jax.block_until_ready(danet_ref(x2, w1, w2, gamma, beta, rm, rv))
    assert out2.shape == (B2, C2, H2, W2)
    assert jnp.allclose(out2, ref2, atol=1e-5, rtol=1e-5), \
        f"max err {jnp.max(jnp.abs(out2 - ref2))}"

    print("KERNEL_OK")
</pallas_src>

<mosaic_0001>
module attributes {stable_mosaic.version = 11 : i64} {
  func.func @_danet_kernel(%arg0: i32, %arg1: memref<1x32x256xf32, #tpu.memory_space<vmem>>, %arg2: memref<32x4xf32, #tpu.memory_space<vmem>>, %arg3: memref<1x4xf32, #tpu.memory_space<vmem>>, %arg4: memref<4x32xf32, #tpu.memory_space<vmem>>, %arg5: memref<1x32x256xf32, #tpu.memory_space<vmem>>) attributes {dimension_semantics = [#tpu.dimension_semantics<parallel>], iteration_bounds = array<i64: 2>, scalar_prefetch = 0 : i64, scratch_operands = 0 : i64, tpu.core_type = #tpu.core_type<tc>, window_params = [{transform_indices = @transform_0, window_bounds = array<i64: 1, 32, 256>}, {pipeline_mode = #tpu.pipeline_mode<synchronous>, transform_indices = @transform_1, window_bounds = array<i64: 32, 4>}, {pipeline_mode = #tpu.pipeline_mode<synchronous>, transform_indices = @transform_2, window_bounds = array<i64: 1, 4>}, {pipeline_mode = #tpu.pipeline_mode<synchronous>, transform_indices = @transform_3, window_bounds = array<i64: 4, 32>}, {transform_indices = @transform_4, window_bounds = array<i64: 1, 32, 256>}]} {
    %c0 = arith.constant 0 : index
    %c0_0 = arith.constant 0 : index
    %c0_1 = arith.constant 0 : index
    %0 = vector.load %arg1[%c0, %c0_0, %c0_1] : memref<1x32x256xf32, #tpu.memory_space<vmem>>, vector<1x32x256xf32>
    %cst = arith.constant dense<0.000000e+00> : vector<1x32xf32>
    %1 = vector.multi_reduction <add>, %0, %cst [2] : vector<1x32x256xf32> to vector<1x32xf32>
    %cst_2 = arith.constant 3.906250e-03 : f32
    %2 = vector.broadcast %cst_2 : f32 to vector<1x32xf32>
    %3 = arith.mulf %1, %2 : vector<1x32xf32>
    %c0_3 = arith.constant 0 : index
    %c0_4 = arith.constant 0 : index
    %4 = vector.load %arg2[%c0_3, %c0_4] : memref<32x4xf32, #tpu.memory_space<vmem>>, vector<32x4xf32>
    %cst_5 = arith.constant dense<0.000000e+00> : vector<1x4xf32>
    %5 = tpu.matmul %3, %4, %cst_5 {dimension_numbers = #tpu.dot_dimension_numbers<[1], [0], [0], [1], [0, 0, 1, 1], [], []>} : vector<1x32xf32>, vector<32x4xf32>, vector<1x4xf32> -> vector<1x4xf32>
    %c0_6 = arith.constant 0 : index
    %c0_7 = arith.constant 0 : index
    %6 = vector.load %arg3[%c0_6, %c0_7] : memref<1x4xf32, #tpu.memory_space<vmem>>, vector<1x4xf32>
    %7 = arith.addf %5, %6 : vector<1x4xf32>
    %cst_8 = arith.constant 0.000000e+00 : f32
    %8 = vector.broadcast %cst_8 : f32 to vector<1x4xf32>
    %9 = arith.maximumf %7, %8 : vector<1x4xf32>
    %c0_9 = arith.constant 0 : index
    %c0_10 = arith.constant 0 : index
    %10 = vector.load %arg4[%c0_9, %c0_10] : memref<4x32xf32, #tpu.memory_space<vmem>>, vector<4x32xf32>
    %cst_11 = arith.constant dense<0.000000e+00> : vector<1x32xf32>
    %11 = tpu.matmul %9, %10, %cst_11 {dimension_numbers = #tpu.dot_dimension_numbers<[1], [0], [0], [1], [0, 0, 1, 1], [], []>} : vector<1x4xf32>, vector<4x32xf32>, vector<1x32xf32> -> vector<1x32xf32>
    %12 = arith.negf %11 : vector<1x32xf32>
    %13 = math.exp %12 : vector<1x32xf32>
    %cst_12 = arith.constant 1.000000e+00 : f32
    %14 = vector.broadcast %cst_12 : f32 to vector<1x32xf32>
    %15 = arith.addf %14, %13 : vector<1x32xf32>
    %16 = arith.divf %14, %15 : vector<1x32xf32>
    %c0_13 = arith.constant 0 : index
    %c0_14 = arith.constant 0 : index
    %c0_15 = arith.constant 0 : index
    %17 = vector.load %arg1[%c0_13, %c0_14, %c0_15] : memref<1x32x256xf32, #tpu.memory_space<vmem>>, vector<1x32x256xf32>
    %18 = vector.shape_cast %16 : vector<1x32xf32> to vector<1x32x1xf32>
    %19 = vector.broadcast %18 : vector<1x32x1xf32> to vector<1x32x256xf32>
    %20 = arith.mulf %17, %19 : vector<1x32x256xf32>
    %c0_16 = arith.constant 0 : index
    %c0_17 = arith.constant 0 : index
    %c0_18 = arith.constant 0 : index
    %21 = vector.load %arg5[%c0_16, %c0_17, %c0_18] : memref<1x32x256xf32, #tpu.memory_space<vmem>>, vector<1x32x256xf32>
    tpu.vector_store %arg5[%c0_16, %c0_17, %c0_18], %20 {strides = array<i32>} : memref<1x32x256xf32, #tpu.memory_space<vmem>>, vector<1x32x256xf32>,
    return
  }
  func.func @transform_0(%arg0: i32) -> (i32, i32, i32) {
    %c0_i32 = arith.constant 0 : i32
    %c0_i32_0 = arith.constant 0 : i32
    %c0_i32_1 = arith.constant 0 : i32
    return %arg0, %c0_i32, %c0_i32_0 : i32, i32, i32
  }
  func.func @transform_1(%arg0: i32) -> (i32, i32) {
    %c0_i32 = arith.constant 0 : i32
    %c0_i32_0 = arith.constant 0 : i32
    %c0_i32_1 = arith.constant 0 : i32
    return %c0_i32, %c0_i32_0 : i32, i32
  }
  func.func @transform_2(%arg0: i32) -> (i32, i32) {
    %c0_i32 = arith.constant 0 : i32
    %c0_i32_0 = arith.constant 0 : i32
    %c0_i32_1 = arith.constant 0 : i32
    return %c0_i32, %c0_i32_0 : i32, i32
  }
  func.func @transform_3(%arg0: i32) -> (i32, i32) {
    %c0_i32 = arith.constant 0 : i32
    %c0_i32_0 = arith.constant 0 : i32
    %c0_i32_1 = arith.constant 0 : i32
    return %c0_i32, %c0_i32_0 : i32, i32
  }
  func.func @transform_4(%arg0: i32) -> (i32, i32, i32) {
    %c0_i32 = arith.constant 0 : i32
    %c0_i32_0 = arith.constant 0 : i32
    %c0_i32_1 = arith.constant 0 : i32
    return %arg0, %c0_i32, %c0_i32_0 : i32, i32, i32
  }
}

</mosaic_0001>

<llo_original>
// kernel: tpu_custom_call.1
$region0: #{tpu_custom_call.1}
  #allocation0 [shape = 'u32[]', space=smem, size = 0x4, offset = 0x4, fixed_abs, tag = 'smem constant byte address 0x4 - core index']
  #allocation1 [shape = 'u32[144,128]{1,0:T(1,128)}', space=vmem, size = 0x12000, scoped, tag = 'internal scratch']
  %s0 = inlined_call_operand.hbm [shape: f32[2,32,256], index: 0, kind: input, shape index: {}]
  %s1 = inlined_call_operand.vmem [shape: f32[32,4], index: 1, kind: input, shape index: {}]
  %s2 = inlined_call_operand.vmem [shape: f32[1,4], index: 2, kind: input, shape index: {}]
  %s3 = inlined_call_operand.vmem [shape: f32[4,32], index: 3, kind: input, shape index: {}]
  %s4 = inlined_call_operand.hbm [shape: f32[2,32,256], index: 4, kind: output, shape index: {}]
  %s5 = sld [smem:[#allocation0]]
  $region53: #{tpu_custom_call.1} parent=0
    _
  %s7 = ssub.s32 1, %s5
  %s8 = scalar_select 0, %s7, %s5
  $region1: #{tpu_custom_call.1} parent=0
    #allocation2 [shape = 'u8[65536]{0}', space=vmem, size = 0x10000, scoped, tag = 'input window, operand 0']
    #allocation3 [shape = 's32[2]{0}', space=sflag, size = 0x8, scoped, tag = 'scoped memory for tpu_custom_call.1']
    #allocation4 [shape = 's32[2]{0}', space=sflag, size = 0x8, scoped, tag = 'scoped memory for tpu_custom_call.1']
    #allocation5 [shape = 'u8[65536]{0}', space=vmem, size = 0x10000, scoped, tag = 'output window, operand 0']
    %9 = vsyncpa [#allocation3], 0
    %s10 = scalar_lea.sflag [#allocation3], 1
    %11 = vsyncpa %s10, 0
    %12 = vsyncpa [#allocation4], 0
    %s13 = scalar_lea.sflag [#allocation4], 1
    %14 = vsyncpa %s13, 0
    loop: start=0, step=1, limit=4
    $region2: #{tpu_custom_call.1} parent=1 // loop_pre_header
      _
    $region3: #{tpu_custom_call.1} parent=1 // loop_header
      %s16 = sphi 0, %s20
      %p17 = scmp.ge.s32.totalorder %s16, 4
      %s26 = sphi 0, %s28
      %s29 = sphi 0, %s26
      %s30 = sphi 0, %s29
      %s46 = sphi 0, %s30
      %s50 = sphi 0, %s50
      %s52 = sphi 0, %s50
      %s53 = sphi 0, %s52
      %s67 = sphi 0, %s53
      %s71 = sphi 0, %s71
      %s73 = sphi 0, %s71
      %s74 = sphi 0, %s73
      %s88 = sphi 0, %s74
      %s92 = sphi 0, %s92
      %s94 = sphi 0, %s92
      %s95 = sphi 0, %s94
      %s109 = sphi 0, %s95
      %s115 = sphi 0, %s117
      %s118 = sphi 0, %s115
      %s119 = sphi 0, %s118
      %s135 = sphi 0, %s119
    $region4: #{tpu_custom_call.1} parent=1 // loop_header_branch
      %19 = sbr.rel (%p17) target = $region8
    $region5: #{tpu_custom_call.1} parent=1 // loop_body
      %s21 = ssub.s32 %s16, 1
      %s22 = ssub.s32 %s16, 2
      %s23 = sadd.s32 %s16, 1
      %s24 = ssub.s32 %s16, %s23
      %p25 = scmp.eq.s32.totalorder %s24, 0
      %s27 = sadd.s32 %s26, 1
      %s28 = scalar_select %p25, %s26, %s27
      %p31 = pneg %p25
      %p32 = scmp.eq.s32.totalorder %s16, 1
      %p33 = por %p31, %p32
      %p34 = scmp.ne.s32.totalorder %s26, %s29
      %p35 = scmp.eq.s32.totalorder %s16, 0
      %p36 = por %p34, %p35
      %p37 = scmp.ne.s32.totalorder %s26, %s29
      %p38 = scmp.eq.s32.totalorder %s21, 1
      %p39 = por %p37, %p38
      %p40 = scmp.ne.s32.totalorder %s29, %s30
      %p41 = scmp.eq.s32.totalorder %s21, 0
      %p42 = por %p40, %p41
      %p43 = scmp.ne.s32.totalorder %s29, %s30
      %p44 = scmp.eq.s32.totalorder %s22, 1
      %p45 = por %p43, %p44
      %p47 = scmp.ne.s32.totalorder %s30, %s46
      %p48 = scmp.eq.s32.totalorder %s22, 0
      %p49 = por %p47, %p48
      %s51 = sadd.s32 %s50, 1
      %p54 = scmp.eq.s32.totalorder %s16, 1
      %p55 = scmp.ne.s32.totalorder %s50, %s52
      %p56 = scmp.eq.s32.totalorder %s16, 0
      %p57 = por %p55, %p56
      %p58 = scmp.ne.s32.totalorder %s50, %s52
      %p59 = scmp.eq.s32.totalorder %s21, 1
      %p60 = por %p58, %p59
      %p61 = scmp.ne.s32.totalorder %s52, %s53
      %p62 = scmp.eq.s32.totalorder %s21, 0
      %p63 = por %p61, %p62
      %p64 = scmp.ne.s32.totalorder %s52, %s53
      %p65 = scmp.eq.s32.totalorder %s22, 1
      %p66 = por %p64, %p65
      %p68 = scmp.ne.s32.totalorder %s53, %s67
      %p69 = scmp.eq.s32.totalorder %s22, 0
      %p70 = por %p68, %p69
      %s72 = sadd.s32 %s71, 1
      %p75 = scmp.eq.s32.totalorder %s16, 1
      %p76 = scmp.ne.s32.totalorder %s71, %s73
      %p77 = scmp.eq.s32.totalorder %s16, 0
      %p78 = por %p76, %p77
      %p79 = scmp.ne.s32.totalorder %s71, %s73
      %p80 = scmp.eq.s32.totalorder %s21, 1
      %p81 = por %p79, %p80
      %p82 = scmp.ne.s32.totalorder %s73, %s74
      %p83 = scmp.eq.s32.totalorder %s21, 0
      %p84 = por %p82, %p83
      %p85 = scmp.ne.s32.totalorder %s73, %s74
      %p86 = scmp.eq.s32.totalorder %s22, 1
      %p87 = por %p85, %p86
      %p89 = scmp.ne.s32.totalorder %s74, %s88
      %p90 = scmp.eq.s32.totalorder %s22, 0
      %p91 = por %p89, %p90
      %s93 = sadd.s32 %s92, 1
      %p96 = scmp.eq.s32.totalorder %s16, 1
      %p97 = scmp.ne.s32.totalorder %s92, %s94
      %p98 = scmp.eq.s32.totalorder %s16, 0
      %p99 = por %p97, %p98
      %p100 = scmp.ne.s32.totalorder %s92, %s94
      %p101 = scmp.eq.s32.totalorder %s21, 1
      %p102 = por %p100, %p101
      %p103 = scmp.ne.s32.totalorder %s94, %s95
      %p104 = scmp.eq.s32.totalorder %s21, 0
      %p105 = por %p103, %p104
      %p106 = scmp.ne.s32.totalorder %s94, %s95
      %p107 = scmp.eq.s32.totalorder %s22, 1
      %p108 = por %p106, %p107
      %p110 = scmp.ne.s32.totalorder %s95, %s109
      %p111 = scmp.eq.s32.totalorder %s22, 0
      %p112 = por %p110, %p111
      %s113 = ssub.s32 %s16, %s23
      %p114 = scmp.eq.s32.totalorder %s113, 0
      %s116 = sadd.s32 %s115, 1
      %s117 = scalar_select %p114, %s115, %s116
      %p120 = pneg %p114
      %p121 = scmp.eq.s32.totalorder %s16, 1
      %p122 = por %p120, %p121
      %p123 = scmp.ne.s32.totalorder %s115, %s118
      %p124 = scmp.eq.s32.totalorder %s16, 0
      %p125 = por %p123, %p124
      %p126 = scmp.ne.s32.totalorder %s115, %s118
      %p127 = scmp.eq.s32.totalorder %s21, 1
      %p128 = por %p126, %p127
      %p129 = scmp.ne.s32.totalorder %s118, %s119
      %p130 = scmp.eq.s32.totalorder %s21, 0
      %p131 = por %p129, %p130
      %p132 = scmp.ne.s32.totalorder %s118, %s119
      %p133 = scmp.eq.s32.totalorder %s22, 1
      %p134 = por %p132, %p133
      %p136 = scmp.ne.s32.totalorder %s119, %s135
      %p137 = scmp.eq.s32.totalorder %s22, 0
      %p138 = por %p136, %p137
      %p139 = scmp.le.s32.totalorder 1, %s16
      %p140 = scmp.lt.s32.totalorder %s16, 3
      %p141 = pnand %p139, %p140
      %p142 = pneg %p141
      // Predicated region
      $region9: #{tpu_custom_call.1} parent=5 // pred_check
        _
      $region10: #{tpu_custom_call.1} parent=5 // pred_check_branch
        %144 = sbr.rel (%p141) target = $region12
      $region11: #{tpu_custom_call.1} parent=5 // pred_region
        %s145 = ssub.s32 %s16, 1
        // Predicated region
        $region13: #{tpu_custom_call.1} parent=11 // pred_check
          %p146 = pneg %p63
        $region14: #{tpu_custom_call.1} parent=11 // pred_check_branch
          %148 = sbr.rel (%p146) target = $region16
        $region15: #{tpu_custom_call.1} parent=11 // pred_region
          _
        $region16: #{tpu_custom_call.1} parent=11 // pred_fallthru
          _
        // Predicated region
        $region17: #{tpu_custom_call.1} parent=11 // pred_check
          %p149 = pneg %p84
        $region18: #{tpu_custom_call.1} parent=11 // pred_check_branch
          %151 = sbr.rel (%p149) target = $region20
        $region19: #{tpu_custom_call.1} parent=11 // pred_region
          _
        $region20: #{tpu_custom_call.1} parent=11 // pred_fallthru
          _
        // Predicated region
        $region21: #{tpu_custom_call.1} parent=11 // pred_check
          %p152 = pneg %p105
        $region22: #{tpu_custom_call.1} parent=11 // pred_check_branch
          %154 = sbr.rel (%p152) target = $region24
        $region23: #{tpu_custom_call.1} parent=11 // pred_region
          _
        $region24: #{tpu_custom_call.1} parent=11 // pred_fallthru
          _
      $region12: #{tpu_custom_call.1} parent=5 // pred_fallthru
        _
      %p155 = scmp.lt.s32.totalorder %s16, 2
      // Predicated region
      $region25: #{tpu_custom_call.1} parent=5 // pred_check
        %p156 = pneg %p155
      $region26: #{tpu_custom_call.1} parent=5 // pred_check_branch
        %158 = sbr.rel (%p156) target = $region28
      $region27: #{tpu_custom_call.1} parent=5 // pred_region
        // Predicated region
        $region29: #{tpu_custom_call.1} parent=27 // pred_check
          %p159 = pneg %p36
        $region30: #{tpu_custom_call.1} parent=27 // pred_check_branch
          %161 = sbr.rel (%p159) target = $region32
        $region31: #{tpu_custom_call.1} parent=27 // pred_region
          %s162 = sand.u32 %s26, 1
          %s163 = scalar_lea.sflag [#allocation3], %s162
          %s164 = sand.u32 %s26, 1
          %s165 = smul.addr %s164, 64
          %s166 = scalar_lea.vmem [#allocation2], %s165
          %s168 = ssub.s32 1024, 1024
          %169 = vsyncadd %s163, %s168
          %s170 = smul.addr %s16, 8
          %s171 = smul.addr %s170, 128
          %s172 = scalar_lea.hbm %s0, %s171
          %s173 = sshll.u32 %s166, 4
          %s174 = int_to_ptr.vmem [resolvable:$true] %s173
          %179 = dma.hbm_to_vmem [thread:$0]  %s172, 1024, %s174, %s163, 256, 256, 16
        $region32: #{tpu_custom_call.1} parent=27 // pred_fallthru
          _
      $region28: #{tpu_custom_call.1} parent=5 // pred_fallthru
        _
      %p180 = scmp.le.s32.totalorder 1, %s16
      %p181 = scmp.lt.s32.totalorder %s16, 3
      %p182 = pnand %p180, %p181
      %p183 = pneg %p182
      // Predicated region
      $region33: #{tpu_custom_call.1} parent=5 // pred_check
        _
      $region34: #{tpu_custom_call.1} parent=5 // pred_check_branch
        %185 = sbr.rel (%p182) target = $region36
      $region35: #{tpu_custom_call.1} parent=5 // pred_region
        %s186 = ssub.s32 %s16, 1
        %s187 = sand.u32 %s29, 1
        %s188 = scalar_lea.sflag [#allocation3], %s187
        %s189 = sand.u32 %s29, 1
        %s190 = smul.addr %s189, 64
        %s191 = scalar_lea.vmem [#allocation2], %s190
        // Predicated region
        $region37: #{tpu_custom_call.1} parent=35 // pred_check
          %p192 = pneg %p42
        $region38: #{tpu_custom_call.1} parent=35 // pred_check_branch
          %194 = sbr.rel (%p192) target = $region40
        $region39: #{tpu_custom_call.1} parent=35 // pred_region
          %195 = dma.done %s188, 1024
        $region40: #{tpu_custom_call.1} parent=35 // pred_fallthru
          _
        %s196 = sand.u32 %s29, 1
        %s197 = scalar_lea.sflag [#allocation3], %s196
        %s198 = sand.u32 %s29, 1
        %s199 = smul.addr %s198, 64
        %s200 = scalar_lea.vmem [#allocation2], %s199
        %p201 = pneg %p42
        %p202 = pneg %p39
        %p203 = pneg %p63
        %p204 = pneg %p60
        %p205 = pneg %p84
        %p206 = pneg %p81
        %p207 = pneg %p105
        %p208 = pneg %p102
        %p209 = pneg %p131
        %p210 = pneg %p128
        %s211 = sand.u32 %s118, 1
        %s212 = scalar_lea.sflag [#allocation4], %s211
        %s213 = sand.u32 %s118, 1
        %s214 = smul.addr %s213, 64
        %s215 = scalar_lea.vmem [#allocation5], %s214
        %v216 = vld [vmem:[%s191] sm:$0xff]
        %v217 = vld [vmem:[%s191 + $0x8] sm:$0xff]
        %v218 = vld [vmem:[%s191 + $0x10] sm:$0xff]
        %v219 = vld [vmem:[%s191 + $0x18] sm:$0xff]
        %v220 = vld [vmem:[%s191 + $0x20] sm:$0xff]
        %v221 = vld [vmem:[%s191 + $0x28] sm:$0xff]
        %v222 = vld [vmem:[%s191 + $0x30] sm:$0xff]
        %v223 = vld [vmem:[%s191 + $0x38] sm:$0xff]
        %v224 = vadd.f32 %v216, %v217
        %225 = vadd.xlane.f32.xlu0 %v224
        %v226 = vpop.xlane.xlu0 %225
        %v227 = vadd.f32 %v218, %v219
        %228 = vadd.xlane.f32.xlu0 %v227
        %v229 = vpop.xlane.xlu0 %228
        %v230 = vadd.f32 %v220, %v221
        %231 = vadd.xlane.f32.xlu0 %v230
        %v232 = vpop.xlane.xlu0 %231
        %v233 = vadd.f32 %v222, %v223
        %234 = vadd.xlane.f32.xlu0 %v233
        %v235 = vpop.xlane.xlu0 %234
        %v236 = vmul.f32 %v226, 0.00390625
        %v237 = vmul.f32 %v229, 0.00390625
        %v238 = vmul.f32 %v232, 0.00390625
        %v239 = vmul.f32 %v235, 0.00390625
        %v240 = vld [vmem:[%s1] sm:$0xff]
        %v241 = vld [vmem:[%s1 + $0x8] sm:$0xff]
        %v242 = vld [vmem:[%s1 + $0x10] sm:$0xff]
        %v243 = vld [vmem:[%s1 + $0x18] sm:$0xff]
        %v244 = vld [vmem:[%s2] sm:$0x1]
        %v249 = vlaneseq
        %v250 = vand.u32 %v249, 127
        %v251 = vlaneseq
        %v252 = vshrl.u32 %v251, 7
        %v253 = vsub.s32 %v250, %v252
        %v254 = vrot.slane %v236, %v253
        %v255 = vadd.s32 %v250, 4294967288
        %v256 = vlaneseq
        %v257 = vshrl.u32 %v256, 7
        %v258 = vsub.s32 %v255, %v257
        %v259 = vrot.slane %v237, %v258
        %vm260 = vcmask 130112
        %v261 = vsel %vm260, %v259, %v254
        %v262 = vadd.s32 %v250, 4294967280
        %v263 = vlaneseq
        %v264 = vshrl.u32 %v263, 7
        %v265 = vsub.s32 %v262, %v264
        %v266 = vrot.slane %v238, %v265
        %vm267 = vcmask 195712
        %v268 = vsel %vm267, %v266, %v261
        %v269 = vadd.s32 %v250, 4294967272
        %v270 = vlaneseq
        %v271 = vshrl.u32 %v270, 7
        %v272 = vsub.s32 %v269, %v271
        %v273 = vrot.slane %v239, %v272
        %vm274 = vcmask 261312
        %v275 = vsel %vm274, %v273, %v268
        %vm276 = vcmask 261120
        %v277 = vsel %vm276, %v275, 0
        %279 = vmatprep.subr.mxu0 0.0
        %280 = vmatpush1.msra.mxu0 0.0
        %281 = vmatprep.subr.mxu0 0.0
        %282 = vmatpush1.msra.mxu0 0.0
        %283 = vmatprep.subr.mxu0 0.0
        %284 = vmatpush1.msra.mxu0 0.0
        %285 = vmatprep.subr.mxu0 0.0
        %286 = vmatpush1.msra.mxu0 0.0
        %287 = vmatprep.subr.mxu0 0.0
        %288 = vmatpush1.msra.mxu0 0.0
        %289 = vmatprep.subr.mxu0 0.0
        %290 = vmatpush1.msra.mxu0 0.0
        %291 = vmatprep.subr.mxu0 0.0
        %292 = vmatpush1.msra.mxu0 0.0
        %293 = vmatprep.subr.mxu0 0.0
        %294 = vmatpush1.msra.mxu0 0.0
        %295 = vmatprep.subr.mxu0 0.0
        %296 = vmatpush1.msra.mxu0 0.0
        %297 = vmatprep.subr.mxu0 0.0
        %298 = vmatpush1.msra.mxu0 0.0
        %299 = vmatprep.subr.mxu0 0.0
        %300 = vmatpush1.msra.mxu0 0.0
        %301 = vmatprep.subr.mxu0 0.0
        %302 = vmatpush1.msra.mxu0 0.0
        %303 = vmatprep.subr.mxu0 0.0
        %304 = vmatpush1.msra.mxu0 %v243
        %305 = vmatprep.subr.mxu0 0.0
        %306 = vmatpush1.msra.mxu0 %v242
        %307 = vmatprep.subr.mxu0 0.0
        %308 = vmatpush1.msra.mxu0 %v241
        %309 = vmatprep.subr.mxu0 0.0
        %310 = vmatpush1.msra.mxu0 %v240
        %311 = vmatprep.subr.mxu0 0.0
        %312 = vmatpush2.msra.mxu0 0.0
        %313 = vmatprep.subr.mxu0 0.0
        %314 = vmatpush2.msra.mxu0 0.0
        %315 = vmatprep.subr.mxu0 0.0
        %316 = vmatpush2.msra.mxu0 0.0
        %317 = vmatprep.subr.mxu0 0.0
        %318 = vmatpush2.msra.mxu0 0.0
        %319 = vmatprep.subr.mxu0 0.0
        %320 = vmatpush2.msra.mxu0 0.0
        %321 = vmatprep.subr.mxu0 0.0
        %322 = vmatpush2.msra.mxu0 0.0
        %323 = vmatprep.subr.mxu0 0.0
        %324 = vmatpush2.msra.mxu0 0.0
        %325 = vmatprep.subr.mxu0 0.0
        %326 = vmatpush2.msra.mxu0 0.0
        %327 = vmatprep.subr.mxu0 0.0
        %328 = vmatpush2.msra.mxu0 0.0
        %329 = vmatprep.subr.mxu0 0.0
        %330 = vmatpush2.msra.mxu0 0.0
        %331 = vmatprep.subr.mxu0 0.0
        %332 = vmatpush2.msra.mxu0 0.0
        %333 = vmatprep.subr.mxu0 0.0
        %334 = vmatpush2.msra.mxu0 0.0
        %335 = vmatprep.subr.mxu0 0.0
        %336 = vmatpush2.msra.mxu0 0.0
        %337 = vmatprep.subr.mxu0 0.0
        %338 = vmatpush2.msra.mxu0 0.0
        %339 = vmatprep.subr.mxu0 0.0
        %340 = vmatpush2.msra.mxu0 0.0
        %341 = vmatprep.subr.mxu0 0.0
        %342 = vmatpush2.msra.mxu0 0.0
        %343 = vmatprep.mubr.f32.mxu0 0.0
        %344 = vmatmul.mubr.f32.gmra.mxu0 %v277
        %v345 = vpop.f32.mrf.mxu0
        %v346 = vadd.f32 %v244, %v345
        %v347 = vpop.f32.mrf.mxu0
        %348 = vdwg.mxu0
        %v349 = vmax.f32 %v346, 0.0
        %v350 = vld [vmem:[%s3] sm:$0xf]
        %vm351 = vcmask 31744
        %v353 = vsel %vm351, %v349, 0
        %vm355 = vcmask 1043456
        %v357 = vsel %vm355, %v350, 0
        %359 = vmatprep.subr.mxu0 0.0
        %360 = vmatpush1.msra.mxu0 0.0
        %361 = vmatprep.subr.mxu0 0.0
        %362 = vmatpush1.msra.mxu0 0.0
        %363 = vmatprep.subr.mxu0 0.0
        %364 = vmatpush1.msra.mxu0 0.0
        %365 = vmatprep.subr.mxu0 0.0
        %366 = vmatpush1.msra.mxu0 0.0
        %367 = vmatprep.subr.mxu0 0.0
        %368 = vmatpush1.msra.mxu0 0.0
        %369 = vmatprep.subr.mxu0 0.0
        %370 = vmatpush1.msra.mxu0 0.0
        %371 = vmatprep.subr.mxu0 0.0
        %372 = vmatpush1.msra.mxu0 0.0
        %373 = vmatprep.subr.mxu0 0.0
        %374 = vmatpush1.msra.mxu0 0.0
        %375 = vmatprep.subr.mxu0 0.0
        %376 = vmatpush1.msra.mxu0 0.0
        %377 = vmatprep.subr.mxu0 0.0
        %378 = vmatpush1.msra.mxu0 0.0
        %379 = vmatprep.subr.mxu0 0.0
        %380 = vmatpush1.msra.mxu0 0.0
        %381 = vmatprep.subr.mxu0 0.0
        %382 = vmatpush1.msra.mxu0 0.0
        %383 = vmatprep.subr.mxu0 0.0
        %384 = vmatpush1.msra.mxu0 0.0
        %385 = vmatprep.subr.mxu0 0.0
        %386 = vmatpush1.msra.mxu0 0.0
        %387 = vmatprep.subr.mxu0 0.0
        %388 = vmatpush1.msra.mxu0 0.0
        %389 = vmatprep.subr.mxu0 0.0
        %390 = vmatpush1.msra.mxu0 %v357
        %391 = vmatprep.subr.mxu0 0.0
        %392 = vmatpush2.msra.mxu0 0.0
        %393 = vmatprep.subr.mxu0 0.0
        %394 = vmatpush2.msra.mxu0 0.0
        %395 = vmatprep.subr.mxu0 0.0
        %396 = vmatpush2.msra.mxu0 0.0
        %397 = vmatprep.subr.mxu0 0.0
        %398 = vmatpush2.msra.mxu0 0.0
        %399 = vmatprep.subr.mxu0 0.0
        %400 = vmatpush2.msra.mxu0 0.0
        %401 = vmatprep.subr.mxu0 0.0
        %402 = vmatpush2.msra.mxu0 0.0
        %403 = vmatprep.subr.mxu0 0.0
        %404 = vmatpush2.msra.mxu0 0.0
        %405 = vmatprep.subr.mxu0 0.0
        %406 = vmatpush2.msra.mxu0 0.0
        %407 = vmatprep.subr.mxu0 0.0
        %408 = vmatpush2.msra.mxu0 0.0
        %409 = vmatprep.subr.mxu0 0.0
        %410 = vmatpush2.msra.mxu0 0.0
        %411 = vmatprep.subr.mxu0 0.0
        %412 = vmatpush2.msra.mxu0 0.0
        %413 = vmatprep.subr.mxu0 0.0
        %414 = vmatpush2.msra.mxu0 0.0
        %415 = vmatprep.subr.mxu0 0.0
        %416 = vmatpush2.msra.mxu0 0.0
        %417 = vmatprep.subr.mxu0 0.0
        %418 = vmatpush2.msra.mxu0 0.0
        %419 = vmatprep.subr.mxu0 0.0
        %420 = vmatpush2.msra.mxu0 0.0
        %421 = vmatprep.subr.mxu0 0.0
        %422 = vmatpush2.msra.mxu0 0.0
        %423 = vmatprep.mubr.f32.mxu0 0.0
        %424 = vmatmul.mubr.f32.gmra.mxu0 %v353
        %v425 = vpop.f32.mrf.mxu0
        %v426 = vadd.f32 0.0, %v425
        %v427 = vpop.f32.mrf.mxu0
        %428 = vdwg.mxu0
        %v429 = vxor.u32 %v426, 2147483648
        %v430 = vmul.f32 %v429, 1.442695
        %v431 = vpow.pop %v430
        %v432 = vadd.f32 %v431, 1.0
        %v433 = vrcp.pop %v432
        %v434 = vmul.f32 1.0, %v433
        %v435 = vlaneseq
        %v436 = vshrl.u32 %v435, 7
        %v437 = vsub.s32 0, %v436
        %v438 = vrot.slane %v434, %v437
        %440 = vbcast.lane.b32.xlu0 %v438, 256
        %v441 = vpop.permute.xlu0 %440
        %s443 = sor.u32 256, 8
        %444 = vbcast.lane.b32.xlu0 %v438, %s443
        %v445 = vpop.permute.xlu0 %444
        %s447 = sor.u32 256, 16
        %448 = vbcast.lane.b32.xlu0 %v438, %s447
        %v449 = vpop.permute.xlu0 %448
        %s451 = sor.u32 256, 24
        %452 = vbcast.lane.b32.xlu0 %v438, %s451
        %v453 = vpop.permute.xlu0 %452
        %v454 = vmul.f32 %v216, %v441
        %v455 = vmul.f32 %v217, %v441
        %v456 = vmul.f32 %v218, %v445
        %v457 = vmul.f32 %v219, %v445
        %v458 = vmul.f32 %v220, %v449
        %v459 = vmul.f32 %v221, %v449
        %v460 = vmul.f32 %v222, %v453
        %v461 = vmul.f32 %v223, %v453
        %462 = vst [vmem:[%s215] sm:$0xff] %v454
        %463 = vst [vmem:[%s215 + $0x8] sm:$0xff] %v455
        %464 = vst [vmem:[%s215 + $0x10] sm:$0xff] %v456
        %465 = vst [vmem:[%s215 + $0x18] sm:$0xff] %v457
        %466 = vst [vmem:[%s215 + $0x20] sm:$0xff] %v458
        %467 = vst [vmem:[%s215 + $0x28] sm:$0xff] %v459
        %468 = vst [vmem:[%s215 + $0x30] sm:$0xff] %v460
        %469 = vst [vmem:[%s215 + $0x38] sm:$0xff] %v461
        %s470 = sand.u32 %s118, 1
        %s471 = scalar_lea.sflag [#allocation4], %s470
        %s472 = sand.u32 %s118, 1
        %s473 = smul.addr %s472, 64
        %s474 = scalar_lea.vmem [#allocation5], %s473
        // Predicated region
        $region41: #{tpu_custom_call.1} parent=35 // pred_check
          %p475 = pneg %p128
        $region42: #{tpu_custom_call.1} parent=35 // pred_check_branch
          %477 = sbr.rel (%p475) target = $region44
        $region43: #{tpu_custom_call.1} parent=35 // pred_region
          %s479 = ssub.s32 1024, 1024
          %480 = vsyncadd %s471, %s479
          %s481 = smul.addr %s21, 8
          %s482 = smul.addr %s481, 128
          %s483 = scalar_lea.hbm %s4, %s482
          %s484 = sshll.u32 %s474, 4
          %s485 = int_to_ptr.vmem [resolvable:$true] %s484
          %490 = dma.vmem_to_hbm [thread:$0]  %s485, 1024, %s483, %s471, 256, 256, 16
        $region44: #{tpu_custom_call.1} parent=35 // pred_fallthru
          _
      $region36: #{tpu_custom_call.1} parent=5 // pred_fallthru
        _
      %p491 = scmp.le.s32.totalorder 2, %s16
      // Predicated region
      $region45: #{tpu_custom_call.1} parent=5 // pred_check
        %p492 = pneg %p491
      $region46: #{tpu_custom_call.1} parent=5 // pred_check_branch
        %494 = sbr.rel (%p492) target = $region48
      $region47: #{tpu_custom_call.1} parent=5 // pred_region
        %s495 = ssub.s32 %s16, 2
        // Predicated region
        $region49: #{tpu_custom_call.1} parent=47 // pred_check
          %p496 = pneg %p134
        $region50: #{tpu_custom_call.1} parent=47 // pred_check_branch
          %498 = sbr.rel (%p496) target = $region52
        $region51: #{tpu_custom_call.1} parent=47 // pred_region
          %s499 = sand.u32 %s119, 1
          %s500 = scalar_lea.sflag [#allocation4], %s499
          %s501 = sand.u32 %s119, 1
          %s502 = smul.addr %s501, 64
          %s503 = scalar_lea.vmem [#allocation5], %s502
          %504 = dma.done %s500, 1024
        $region52: #{tpu_custom_call.1} parent=47 // pred_fallthru
          _
      $region48: #{tpu_custom_call.1} parent=5 // pred_fallthru
        _
    $region6: #{tpu_custom_call.1} parent=1 // loop_footer
      %s20 = sadd.s32 1, %s16
    $region7: #{tpu_custom_call.1} parent=1 // loop_footer_branch
      %15 = sbr.rel target = $region3
    $region8: #{tpu_custom_call.1} parent=1 // loop_exit
      _
    %505 = vsyncpa [#allocation3], 1
    %s506 = scalar_lea.sflag [#allocation3], 1
    %507 = vsyncpa %s506, 1
    %508 = vsyncpa [#allocation4], 1
    %s509 = scalar_lea.sflag [#allocation4], 1
    %510 = vsyncpa %s509, 1

</llo_original>
